<compile_context>
chip_gen: v6e
topology: v6e:2x2x1
jax: 0.10.0
libtpu: 0.0.40
codegen_flags: <defaults>
</compile_context>

<pallas_src>
import jax
import jax.numpy as jnp
from jax.experimental import pallas as pl
from jax.experimental.pallas import tpu as pltpu


# ----------------------------------------------------------------------------
# small helpers
# ----------------------------------------------------------------------------
def _round_up(x, m):
    return ((x + m - 1) // m) * m


def _round_down(x, m):
    return (x // m) * m


def _pad_lastdim(v, n):
    d = v.shape[-1]
    if d == n:
        return v
    return jnp.pad(v, ((0, 0), (0, n - d)))


def _vmem_budget_bytes():
    """~75% of physical VMEM, always leaving >=12 MiB for Mosaic scratch and
    DMA windows (v5e/v6e: 128 MiB -> 96 MiB; v7x: 64 MiB -> 48 MiB)."""
    cap = 128 * 1024 * 1024
    try:
        info = pltpu.get_tpu_info()
        cap = int(getattr(info, "vmem_capacity_bytes", cap) or cap)
    except Exception:
        pass
    return int(min(0.75 * cap, cap - 12 * 1024 * 1024))


def _choose_row_tile(R, Dp, Hp, depth, io_bytes, w_bytes, budget_bytes):
    """Largest 256/128-multiple row tile that fits the VMEM budget.
    Keeps >=4 grid steps when R is large (2 per TC on v7x) but never shrinks
    the tile below 256 rows for that reason (v5e/v6e single-TC efficiency)."""
    if R < 128:
        return max(_round_up(R, 8), 8)

    # Resident weights + LN/bias vectors per layer (assume worst-case 2x).
    fixed = depth * (2 * Dp * Hp * w_bytes + (3 * Dp + Hp) * 4)
    avail = max(budget_bytes - 2 * fixed, budget_bytes // 4)
    # Per-row VMEM: double-buffered in + out tiles, plus live f32 intermediates
    # (residual acc, xn/diff, y, h) and bf16 casts, with 1.4x compiler-temp
    # safety factor.
    per_row = 4 * Dp * io_bytes + int(1.4 * ((3 * Dp + Hp) * 4 + (Dp + Hp) * 2))
    max_rows = max(avail // per_row, 128)

    tile = _round_down(max_rows, 256)
    if tile == 0:
        tile = _round_down(max_rows, 128)
    tile = max(tile, 128)

    if R >= 4 * 256:
        # >=4 grid steps (pipelining + both v7x TCs busy), tile stays >=256.
        tile = min(tile, max(_round_down(R // 4, 256), 256))
    elif R >= 2 * 256:
        tile = min(tile, max(_round_down(R // 2, 256), 256))
    # Never larger than the (rounded-up) row range.
    tile = min(tile, _round_up(R, 128))
    return int(tile)


# ----------------------------------------------------------------------------
# kernel
# ----------------------------------------------------------------------------
def _make_kernel(depth, d_true, d_pad, matmul_dtype):
    """Kernel closure: `depth` FeatureMixerLayers applied to one resident row
    tile. Residual stream `acc` is kept in f32 across layers."""

    def kernel(x_ref, gamma_ref, beta_ref, w1_ref, b1_ref, w2_ref, b2_ref,
               o_ref):
        acc = x_ref[...].astype(jnp.float32)                     # (Rt, Dp)

        if d_pad != d_true:
            lane = jax.lax.broadcasted_iota(jnp.int32, (1, d_pad), 1)
            lane_mask = lane < d_true                            # hoisted
        inv_d = 1.0 / d_true

        for l in range(depth):                                   # static unroll
            # --- LayerNorm over the TRUE feature dim (eps=1e-5, torch default)
            # Padded lanes of acc are kept at 0, so the plain sum / d_true is
            # exact for the mean; the variance masks padded lanes.
            mean = jnp.sum(acc, axis=-1, keepdims=True) * inv_d
            diff = acc - mean
            if d_pad != d_true:
                diff = jnp.where(lane_mask, diff, 0.0)
            var = jnp.sum(diff * diff, axis=-1, keepdims=True) * inv_d
            xn = diff * jax.lax.rsqrt(var + 1e-5)
            xn = xn * gamma_ref[l] + beta_ref[l]                 # pad lanes -> 0

            # --- Linear1 (D -> H) + ReLU: bf16 operands, f32 MXU accumulation.
            h = jnp.dot(xn.astype(matmul_dtype), w1_ref[l],
                        preferred_element_type=jnp.float32)
            h = jnp.maximum(h + b1_ref[l], 0.0)                  # (Rt, Hp)

            # --- Linear2 (H -> D) + residual.
            y = jnp.dot(h.astype(matmul_dtype), w2_ref[l],
                        preferred_element_type=jnp.float32)
            acc = acc + y + b2_ref[l]                            # (Rt, Dp)

        o_ref[...] = acc.astype(o_ref.dtype)

    return kernel


# ----------------------------------------------------------------------------
# params: pad / cast / stack ONCE
# ----------------------------------------------------------------------------
def _prepare_params(layer_params, matmul_dtype):
    """layer_params: sequence of (gamma, beta, w1, b1, w2, b2).
    gamma/beta/b2: (D,) or (1,D); b1: (H,) or (1,H); w1: (D,H); w2: (H,D).
    Returns stacked, lane-padded device arrays (done once, not per call)."""
    w1_0 = jnp.asarray(layer_params[0][2])
    D, H = int(w1_0.shape[0]), int(w1_0.shape[1])
    Dp, Hp = _round_up(D, 128), _round_up(H, 128)

    gs, bs, w1s, b1s, w2s, b2s = [], [], [], [], [], []
    for (gamma, beta, w1, b1, w2, b2) in layer_params:
        gs.append(_pad_lastdim(jnp.asarray(gamma, jnp.float32).reshape(1, -1), Dp))
        bs.append(_pad_lastdim(jnp.asarray(beta, jnp.float32).reshape(1, -1), Dp))
        w1s.append(jnp.pad(jnp.asarray(w1), ((0, Dp - D), (0, Hp - H)))
                   .astype(matmul_dtype))
        b1s.append(_pad_lastdim(jnp.asarray(b1, jnp.float32).reshape(1, -1), Hp))
        w2s.append(jnp.pad(jnp.asarray(w2), ((0, Hp - H), (0, Dp - D)))
                   .astype(matmul_dtype))
        b2s.append(_pad_lastdim(jnp.asarray(b2, jnp.float32).reshape(1, -1), Dp))

    arrays = (jnp.stack(gs), jnp.stack(bs), jnp.stack(w1s),
              jnp.stack(b1s), jnp.stack(w2s), jnp.stack(b2s))
    return arrays, (D, H, Dp, Hp, len(layer_params))


# ----------------------------------------------------------------------------
# builder: fused stack of `depth` FeatureMixerLayers in ONE pallas_call
# ----------------------------------------------------------------------------
def make_mixvpr_mixer(layer_params, *, matmul_dtype=jnp.bfloat16,
                      io_dtype=None, row_tile=None):
    """Returns a jitted callable f(x: (B, S, D)) -> (B, S, D).

    MixVPR mixes over the flattened spatial/token dim, so callers present that
    dim as the LAST axis (D == in_dim of the LayerNorm/Linear layers).
    With bf16 x (or io_dtype=jnp.bfloat16) the kernel does bf16 activation I/O;
    LayerNorm stats, MXU accumulation and the residual stay f32 inside."""
    arrays, (D, H, Dp, Hp, depth) = _prepare_params(layer_params, matmul_dtype)
    w_bytes = jnp.dtype(matmul_dtype).itemsize
    kernel = _make_kernel(depth, D, Dp, matmul_dtype)
    # Trace-time capability check (no try/except around an executed call).
    single_buffer_weights = hasattr(pl, "Buffered")

    def _const_spec(shape, single_buffer):
        idx = lambda i: (0,) * len(shape)
        if single_buffer:
            return pl.BlockSpec(shape, idx, pipeline_mode=pl.Buffered(1))
        return pl.BlockSpec(shape, idx)

    @jax.jit
    def _apply(x, gamma_s, beta_s, w1_s, b1_s, w2_s, b2_s):
        B, S, Dx = x.shape
        if Dx != D:
            raise ValueError(f"last dim {Dx} != in_dim {D}")
        R = B * S
        io = io_dtype if io_dtype is not None else x.dtype
        io_bytes = jnp.dtype(io).itemsize

        x2 = x.reshape(R, D).astype(io)
        if Dp != D:
            x2 = jnp.pad(x2, ((0, 0), (0, Dp - D)))

        budget = _vmem_budget_bytes()
        tile = (row_tile if row_tile is not None
                else _choose_row_tile(R, Dp, Hp, depth, io_bytes, w_bytes,
                                      budget))
        assert tile % 8 == 0, "row_tile must be a multiple of 8"

        Rp = _round_up(R, tile)
        if Rp != R:
            x2 = jnp.pad(x2, ((0, Rp - R), (0, 0)))
        grid = (Rp // tile,)

        # Explicit scoped-VMEM limit from the estimated footprint.
        fixed = depth * (2 * Dp * Hp * w_bytes + (3 * Dp + Hp) * 4)
        tile_io = 4 * tile * Dp * io_bytes                 # in+out, 2-buffered
        live = int(1.4 * tile * ((3 * Dp + Hp) * 4 + (Dp + Hp) * 2))
        footprint = 2 * fixed + tile_io + live
        vmem_limit = int(min(max(int(footprint * 1.2), 32 * 1024 * 1024),
                             budget))

        cost = pl.CostEstimate(
            flops=depth * 4 * Rp * Dp * Hp,                # two matmuls/layer
            transcendentals=depth * Rp,                    # rsqrt per row/layer
            bytes_accessed=2 * Rp * Dp * io_bytes + fixed,
        )

        in_specs = [
            pl.BlockSpec((tile, Dp), lambda i: (i, 0)),            # x rows
            _const_spec((depth, 1, Dp), False),                    # gamma
            _const_spec((depth, 1, Dp), False),                    # beta
            _const_spec((depth, Dp, Hp), single_buffer_weights),   # W1
            _const_spec((depth, 1, Hp), False),                    # b1
            _const_spec((depth, Hp, Dp), single_buffer_weights),   # W2
            _const_spec((depth, 1, Dp), False),                    # b2
        ]

        out = pl.pallas_call(
            kernel,
            out_shape=jax.ShapeDtypeStruct((Rp, Dp), io),
            grid_spec=pl.GridSpec(
                grid=grid,
                in_specs=in_specs,
                out_specs=pl.BlockSpec((tile, Dp), lambda i: (i, 0)),
            ),
            compiler_params=pltpu.CompilerParams(
                dimension_semantics=("parallel",),
                vmem_limit_bytes=vmem_limit,
                # Let XLA fuse the wrapper-side pad/cast of x into the kernel
                # boundary; weights are plain params (nothing to fuse).
                allow_input_fusion=[True] + [False] * 6,
            ),
            cost_estimate=cost,
        )(x2, gamma_s, beta_s, w1_s, b1_s, w2_s, b2_s)

        return out[:R, :D].reshape(B, S, D)

    def apply(x):
        return _apply(x, *arrays)

    return apply


def feature_mixer_layer(x, gamma, beta, w1, b1, w2, b2, **kwargs):
    """Single FeatureMixerLayer convenience wrapper (spec-equivalent).
    For repeated use prefer building once via make_mixvpr_mixer."""
    return make_mixvpr_mixer([(gamma, beta, w1, b1, w2, b2)], **kwargs)(x)


# ----------------------------------------------------------------------------
# init + reference (pure JAX)
# ----------------------------------------------------------------------------
def init_params(key, in_dim, mlp_ratio=1, dtype=jnp.float32):
    """Matches the module: trunc_normal(std=0.02) weights, zero biases,
    LayerNorm gamma=1 / beta=0. Weights stored as (in, out) (torch W^T)."""
    hidden = int(in_dim * mlp_ratio)
    k1, k2 = jax.random.split(key)
    w1 = (jax.random.truncated_normal(k1, -2.0, 2.0, (in_dim, hidden)) *
          0.02).astype(dtype)
    w2 = (jax.random.truncated_normal(k2, -2.0, 2.0, (hidden, in_dim)) *
          0.02).astype(dtype)
    b1 = jnp.zeros((1, hidden), dtype)
    b2 = jnp.zeros((1, in_dim), dtype)
    gamma = jnp.ones((1, in_dim), dtype)
    beta = jnp.zeros((1, in_dim), dtype)
    return gamma, beta, w1, b1, w2, b2


def _reference(x, gamma, beta, w1, b1, w2, b2, matmul_dtype=jnp.float32):
    xf = x.astype(jnp.float32)
    mean = jnp.mean(xf, axis=-1, keepdims=True)
    var = jnp.mean((xf - mean) ** 2, axis=-1, keepdims=True)
    xn = (xf - mean) * jax.lax.rsqrt(var + 1e-5)
    xn = xn * gamma.reshape(-1) + beta.reshape(-1)
    h = jnp.dot(xn.astype(matmul_dtype), w1.astype(matmul_dtype),
                preferred_element_type=jnp.float32)
    h = jnp.maximum(h + b1.reshape(-1), 0.0)
    y = jnp.dot(h.astype(matmul_dtype), w2.astype(matmul_dtype),
                preferred_element_type=jnp.float32)
    y = y + b2.reshape(-1)
    return (xf + y).astype(x.dtype)


# ----------------------------------------------------------------------------
# self-test
# ----------------------------------------------------------------------------
if __name__ == "__main__":
    key = jax.random.PRNGKey(0)

    # Case 1: single layer, small non-lane-aligned dims (D=32 padded to 128).
    B, S, D = 2, 8, 32
    kx, kp, key = jax.random.split(key, 3)
    x = jax.random.normal(kx, (B, S, D), jnp.float32)
    params = init_params(kp, D, mlp_ratio=1)
    out = jax.block_until_ready(feature_mixer_layer(x, *params))
    assert out.shape == x.shape and out.dtype == x.dtype
    ref_mx = _reference(x, *params, matmul_dtype=jnp.bfloat16)
    ref_f32 = _reference(x, *params)
    assert jnp.allclose(out, ref_mx, atol=5e-3, rtol=5e-3), "mismatch (bf16 ref)"
    assert jnp.allclose(out, ref_f32, atol=3e-2, rtol=3e-2), "mismatch (f32 ref)"

    # Case 2: fused 4-layer MixVPR mixer stack, lane-dense D=128 (activations
    # stay resident in VMEM across all 4 layers — one pallas_call).
    B2, S2, D2, depth = 1, 16, 128, 4
    kx2, key = jax.random.split(key)
    layer_keys = jax.random.split(key, depth)
    x2 = jax.random.normal(kx2, (B2, S2, D2), jnp.float32)
    layers = [init_params(layer_keys[i], D2, mlp_ratio=1) for i in range(depth)]
    stack_fn = make_mixvpr_mixer(layers)
    out2 = jax.block_until_ready(stack_fn(x2))
    ref2 = x2
    for p in layers:
        ref2 = _reference(ref2, *p, matmul_dtype=jnp.bfloat16)
    assert out2.shape == x2.shape and out2.dtype == x2.dtype
    assert jnp.allclose(out2, ref2, atol=1e-2, rtol=1e-2), "mismatch (stack)"

    # Case 3: bf16 activation I/O (same builder; HBM-bound chips benefit).
    x3 = x2.astype(jnp.bfloat16)
    out3 = jax.block_until_ready(stack_fn(x3))
    assert out3.shape == x3.shape and out3.dtype == jnp.bfloat16
    assert jnp.allclose(out3.astype(jnp.float32), ref2, atol=1e-1, rtol=1e-1), \
        "mismatch (bf16 I/O)"

    print("KERNEL_OK")
</pallas_src>

<mosaic_0001>
module attributes {stable_mosaic.version = 11 : i64} {
  func.func @kernel(%arg0: i32, %arg1: memref<16x128xf32, #tpu.memory_space<vmem>>, %arg2: memref<1x1x128xf32, #tpu.memory_space<vmem>>, %arg3: memref<1x1x128xf32, #tpu.memory_space<vmem>>, %arg4: memref<1x128x128xbf16, #tpu.memory_space<vmem>>, %arg5: memref<1x1x128xf32, #tpu.memory_space<vmem>>, %arg6: memref<1x128x128xbf16, #tpu.memory_space<vmem>>, %arg7: memref<1x1x128xf32, #tpu.memory_space<vmem>>, %arg8: memref<16x128xf32, #tpu.memory_space<vmem>>) attributes {dimension_semantics = [#tpu.dimension_semantics<parallel>], iteration_bounds = array<i64: 1>, scalar_prefetch = 0 : i64, scratch_operands = 0 : i64, tpu.core_type = #tpu.core_type<tc>, window_params = [{transform_indices = @transform_0, window_bounds = array<i64: 16, 128>}, {pipeline_mode = #tpu.pipeline_mode<synchronous>, transform_indices = @transform_1, window_bounds = array<i64: 1, 1, 128>}, {pipeline_mode = #tpu.pipeline_mode<synchronous>, transform_indices = @transform_2, window_bounds = array<i64: 1, 1, 128>}, {pipeline_mode = #tpu.pipeline_mode<synchronous>, transform_indices = @transform_3, window_bounds = array<i64: 1, 128, 128>}, {pipeline_mode = #tpu.pipeline_mode<synchronous>, transform_indices = @transform_4, window_bounds = array<i64: 1, 1, 128>}, {pipeline_mode = #tpu.pipeline_mode<synchronous>, transform_indices = @transform_5, window_bounds = array<i64: 1, 128, 128>}, {pipeline_mode = #tpu.pipeline_mode<synchronous>, transform_indices = @transform_6, window_bounds = array<i64: 1, 1, 128>}, {transform_indices = @transform_7, window_bounds = array<i64: 16, 128>}]} {
    %c0 = arith.constant 0 : index
    %c0_0 = arith.constant 0 : index
    %0 = vector.load %arg1[%c0, %c0_0] : memref<16x128xf32, #tpu.memory_space<vmem>>, vector<16x128xf32>
    %1 = tpu.iota {dimensions = array<i32: 1>} : vector<1x128xi32>
    %c32_i32 = arith.constant 32 : i32
    %2 = vector.broadcast %c32_i32 : i32 to vector<1x128xi32>
    %3 = arith.cmpi slt, %1, %2 : vector<1x128xi32>
    %cst = arith.constant dense<0.000000e+00> : vector<16xf32>
    %4 = vector.multi_reduction <add>, %0, %cst [1] : vector<16x128xf32> to vector<16xf32>
    %5 = vector.shape_cast %4 : vector<16xf32> to vector<16x1xf32>
    %cst_1 = arith.constant 3.125000e-02 : f32
    %6 = vector.broadcast %cst_1 : f32 to vector<16x1xf32>
    %7 = arith.mulf %5, %6 : vector<16x1xf32>
    %8 = vector.broadcast %7 : vector<16x1xf32> to vector<16x128xf32>
    %9 = arith.subf %0, %8 : vector<16x128xf32>
    %cst_2 = arith.constant 0.000000e+00 : f32
    %10 = vector.shape_cast %3 : vector<1x128xi1> to vector<1x128xi1>
    %11 = vector.broadcast %10 : vector<1x128xi1> to vector<16x128xi1>
    %12 = vector.broadcast %cst_2 : f32 to vector<16x128xf32>
    %13 = arith.select %11, %9, %12 : vector<16x128xi1>, vector<16x128xf32>
    %14 = arith.mulf %13, %13 : vector<16x128xf32>
    %cst_3 = arith.constant dense<0.000000e+00> : vector<16xf32>
    %15 = vector.multi_reduction <add>, %14, %cst_3 [1] : vector<16x128xf32> to vector<16xf32>
    %16 = vector.shape_cast %15 : vector<16xf32> to vector<16x1xf32>
    %cst_4 = arith.constant 3.125000e-02 : f32
    %17 = vector.broadcast %cst_4 : f32 to vector<16x1xf32>
    %18 = arith.mulf %16, %17 : vector<16x1xf32>
    %cst_5 = arith.constant 9.99999974E-6 : f32
    %19 = vector.broadcast %cst_5 : f32 to vector<16x1xf32>
    %20 = arith.addf %18, %19 : vector<16x1xf32>
    %21 = math.rsqrt %20 : vector<16x1xf32>
    %22 = vector.broadcast %21 : vector<16x1xf32> to vector<16x128xf32>
    %23 = arith.mulf %13, %22 : vector<16x128xf32>
    %c0_6 = arith.constant 0 : index
    %c0_7 = arith.constant 0 : index
    %c0_8 = arith.constant 0 : index
    %24 = vector.load %arg2[%c0_6, %c0_7, %c0_8] : memref<1x1x128xf32, #tpu.memory_space<vmem>>, vector<1x1x128xf32>
    %25 = vector.shape_cast %24 : vector<1x1x128xf32> to vector<1x128xf32>
    %26 = vector.broadcast %25 : vector<1x128xf32> to vector<16x128xf32>
    %27 = arith.mulf %23, %26 : vector<16x128xf32>
    %c0_9 = arith.constant 0 : index
    %c0_10 = arith.constant 0 : index
    %c0_11 = arith.constant 0 : index
    %28 = vector.load %arg3[%c0_9, %c0_10, %c0_11] : memref<1x1x128xf32, #tpu.memory_space<vmem>>, vector<1x1x128xf32>
    %29 = vector.shape_cast %28 : vector<1x1x128xf32> to vector<1x128xf32>
    %30 = vector.broadcast %29 : vector<1x128xf32> to vector<16x128xf32>
    %31 = arith.addf %27, %30 : vector<16x128xf32>
    %32 = arith.truncf %31 : vector<16x128xf32> to vector<16x128xbf16>
    %c0_12 = arith.constant 0 : index
    %c0_13 = arith.constant 0 : index
    %c0_14 = arith.constant 0 : index
    %33 = vector.load %arg4[%c0_12, %c0_13, %c0_14] : memref<1x128x128xbf16, #tpu.memory_space<vmem>>, vector<1x128x128xbf16>
    %34 = vector.shape_cast %33 : vector<1x128x128xbf16> to vector<128x128xbf16>
    %cst_15 = arith.constant dense<0.000000e+00> : vector<16x128xf32>
    %35 = tpu.matmul %32, %34, %cst_15 {dimension_numbers = #tpu.dot_dimension_numbers<[1], [0], [0], [1], [0, 0, 1, 1], [], []>} : vector<16x128xbf16>, vector<128x128xbf16>, vector<16x128xf32> -> vector<16x128xf32>
    %c0_16 = arith.constant 0 : index
    %c0_17 = arith.constant 0 : index
    %c0_18 = arith.constant 0 : index
    %36 = vector.load %arg5[%c0_16, %c0_17, %c0_18] : memref<1x1x128xf32, #tpu.memory_space<vmem>>, vector<1x1x128xf32>
    %37 = vector.shape_cast %36 : vector<1x1x128xf32> to vector<1x128xf32>
    %38 = vector.broadcast %37 : vector<1x128xf32> to vector<16x128xf32>
    %39 = arith.addf %35, %38 : vector<16x128xf32>
    %cst_19 = arith.constant 0.000000e+00 : f32
    %40 = vector.broadcast %cst_19 : f32 to vector<16x128xf32>
    %41 = arith.maximumf %39, %40 : vector<16x128xf32>
    %42 = arith.truncf %41 : vector<16x128xf32> to vector<16x128xbf16>
    %c0_20 = arith.constant 0 : index
    %c0_21 = arith.constant 0 : index
    %c0_22 = arith.constant 0 : index
    %43 = vector.load %arg6[%c0_20, %c0_21, %c0_22] : memref<1x128x128xbf16, #tpu.memory_space<vmem>>, vector<1x128x128xbf16>
    %44 = vector.shape_cast %43 : vector<1x128x128xbf16> to vector<128x128xbf16>
    %cst_23 = arith.constant dense<0.000000e+00> : vector<16x128xf32>
    %45 = tpu.matmul %42, %44, %cst_23 {dimension_numbers = #tpu.dot_dimension_numbers<[1], [0], [0], [1], [0, 0, 1, 1], [], []>} : vector<16x128xbf16>, vector<128x128xbf16>, vector<16x128xf32> -> vector<16x128xf32>
    %46 = arith.addf %0, %45 : vector<16x128xf32>
    %c0_24 = arith.constant 0 : index
    %c0_25 = arith.constant 0 : index
    %c0_26 = arith.constant 0 : index
    %47 = vector.load %arg7[%c0_24, %c0_25, %c0_26] : memref<1x1x128xf32, #tpu.memory_space<vmem>>, vector<1x1x128xf32>
    %48 = vector.shape_cast %47 : vector<1x1x128xf32> to vector<1x128xf32>
    %49 = vector.broadcast %48 : vector<1x128xf32> to vector<16x128xf32>
    %50 = arith.addf %46, %49 : vector<16x128xf32>
    %c0_27 = arith.constant 0 : index
    %c0_28 = arith.constant 0 : index
    %51 = vector.load %arg8[%c0_27, %c0_28] : memref<16x128xf32, #tpu.memory_space<vmem>>, vector<16x128xf32>
    tpu.vector_store %arg8[%c0_27, %c0_28], %50 {strides = array<i32>} : memref<16x128xf32, #tpu.memory_space<vmem>>, vector<16x128xf32>,
    return
  }
  func.func @transform_0(%arg0: i32) -> (i32, i32) {
    %c0_i32 = arith.constant 0 : i32
    %c0_i32_0 = arith.constant 0 : i32
    return %arg0, %c0_i32 : i32, i32
  }
  func.func @transform_1(%arg0: i32) -> (i32, i32, i32) {
    %c0_i32 = arith.constant 0 : i32
    %c0_i32_0 = arith.constant 0 : i32
    %c0_i32_1 = arith.constant 0 : i32
    %c0_i32_2 = arith.constant 0 : i32
    return %c0_i32, %c0_i32_0, %c0_i32_1 : i32, i32, i32
  }
  func.func @transform_2(%arg0: i32) -> (i32, i32, i32) {
    %c0_i32 = arith.constant 0 : i32
    %c0_i32_0 = arith.constant 0 : i32
    %c0_i32_1 = arith.constant 0 : i32
    %c0_i32_2 = arith.constant 0 : i32
    return %c0_i32, %c0_i32_0, %c0_i32_1 : i32, i32, i32
  }
  func.func @transform_3(%arg0: i32) -> (i32, i32, i32) {
    %c0_i32 = arith.constant 0 : i32
    %c0_i32_0 = arith.constant 0 : i32
    %c0_i32_1 = arith.constant 0 : i32
    %c0_i32_2 = arith.constant 0 : i32
    return %c0_i32, %c0_i32_0, %c0_i32_1 : i32, i32, i32
  }
  func.func @transform_4(%arg0: i32) -> (i32, i32, i32) {
    %c0_i32 = arith.constant 0 : i32
    %c0_i32_0 = arith.constant 0 : i32
    %c0_i32_1 = arith.constant 0 : i32
    %c0_i32_2 = arith.constant 0 : i32
    return %c0_i32, %c0_i32_0, %c0_i32_1 : i32, i32, i32
  }
  func.func @transform_5(%arg0: i32) -> (i32, i32, i32) {
    %c0_i32 = arith.constant 0 : i32
    %c0_i32_0 = arith.constant 0 : i32
    %c0_i32_1 = arith.constant 0 : i32
    %c0_i32_2 = arith.constant 0 : i32
    return %c0_i32, %c0_i32_0, %c0_i32_1 : i32, i32, i32
  }
  func.func @transform_6(%arg0: i32) -> (i32, i32, i32) {
    %c0_i32 = arith.constant 0 : i32
    %c0_i32_0 = arith.constant 0 : i32
    %c0_i32_1 = arith.constant 0 : i32
    %c0_i32_2 = arith.constant 0 : i32
    return %c0_i32, %c0_i32_0, %c0_i32_1 : i32, i32, i32
  }
  func.func @transform_7(%arg0: i32) -> (i32, i32) {
    %c0_i32 = arith.constant 0 : i32
    %c0_i32_0 = arith.constant 0 : i32
    return %arg0, %c0_i32 : i32, i32
  }
}

</mosaic_0001>

<llo_original>
// kernel: _apply.2
$region0: #{_apply.2}
  #allocation0 [shape = 'u32[]', space=smem, size = 0x4, offset = 0x4, fixed_abs, tag = 'smem constant byte address 0x4 - core index']
  #allocation1 [shape = 'u32[144,128]{1,0:T(1,128)}', space=vmem, size = 0x12000, scoped, tag = 'internal scratch']
  #allocation2 [shape = 'u32[2048]{0}', space=vmem, size = 0x2000, scoped, tag = 'scoped memory for _apply.2']
  #allocation3 [shape = 'u32[2048]{0}', space=vmem, size = 0x2000, scoped, tag = 'scoped memory for _apply.2']
  #allocation4 [shape = 'u32[2048]{0}', space=vmem, size = 0x2000, scoped, tag = 'scoped memory for _apply.2']
  #allocation5 [shape = 'u32[2048]{0}', space=vmem, size = 0x2000, scoped, tag = 'scoped memory for _apply.2']
  #allocation6 [shape = 'u32[2048]{0}', space=vmem, size = 0x2000, scoped, tag = 'scoped memory for _apply.2']
  %s0 = inlined_call_operand.vmem [shape: f32[1,1,128], index: 0, kind: input, shape index: {}]
  %s1 = inlined_call_operand.vmem [shape: f32[1,1,128], index: 1, kind: input, shape index: {}]
  %s2 = inlined_call_operand.hbm [shape: bf16[1,128,128], index: 2, kind: input, shape index: {}]
  %s3 = inlined_call_operand.vmem [shape: f32[1,1,128], index: 3, kind: input, shape index: {}]
  %s4 = inlined_call_operand.hbm [shape: bf16[1,128,128], index: 4, kind: input, shape index: {}]
  %s5 = inlined_call_operand.vmem [shape: f32[1,1,128], index: 5, kind: input, shape index: {}]
  %s6 = inlined_call_operand.hbm [shape: f32[16,32], index: 6, kind: input, shape index: {}]
  %s7 = inlined_call_operand.<no memory space> [shape: f32[], index: 7, kind: input, shape index: {}]
  %s8 = inlined_call_operand.vmem [shape: f32[16,128], index: 8, kind: output, shape index: {}]
  %s9 = sld [smem:[#allocation0]]
  $region50: #{_apply.2} parent=0
    _
  %s11 = ssub.s32 1, %s9
  %s12 = scalar_select 0, %s11, %s9
  %v13 = vstv %s7
  $region1: #{_apply.2} parent=0
    #allocation7 [shape = 'u8[8192]{0}', space=vmem, size = 0x2000, scoped, tag = 'operand span for operand 6']
    #allocation8 [shape = 's32[1]{0}', space=sflag, size = 0x4, scoped, tag = 'scoped memory for _apply.2']
    #allocation9 [shape = 'u8[32768]{0}', space=vmem, size = 0x8000, scoped, tag = 'input window, operand 3, single buffered']
    #allocation10 [shape = 's32[1]{0}', space=sflag, size = 0x4, scoped, tag = 'scoped memory for _apply.2']
    #allocation11 [shape = 'u8[32768]{0}', space=vmem, size = 0x8000, scoped, tag = 'input window, operand 5, single buffered']
    #allocation12 [shape = 'u8[8192]{0}', space=vmem, size = 0x2000, dematerialized = true, scoped, tag = 'FusionAdapter Buffer %fusion.1 = f32[16,128]{1,0:T(8,128)} fusion(%param_6.1, %param_7), kind=kLoop, calls=%fused_computation.2.clone, metadata={op_name="jit(_apply)/jit(_pad)/pad" stack_frame_id=10}']
    %14 = vsyncpa [#allocation8], 0
    %15 = vsyncpa [#allocation10], 0
    // Predicated region
    $region2: #{_apply.2} parent=1 // pred_check
      _
    $region3: #{_apply.2} parent=1 // pred_check_branch
      %17 = sbr.rel (0) target = $region5
    $region4: #{_apply.2} parent=1 // pred_region
      %s19 = ssub.s32 256, 256
      %20 = vsyncadd [#allocation8], %s19
      %s21 = sshll.u32 [#allocation7], 4
      %s22 = int_to_ptr.vmem [resolvable:$true] %s21
      %27 = dma.hbm_to_vmem [thread:$0]  %s6, 256, %s22, [#allocation8], 128, 128, 8
    $region5: #{_apply.2} parent=1 // pred_fallthru
      _
    // Predicated region
    $region6: #{_apply.2} parent=1 // pred_check
      _
    $region7: #{_apply.2} parent=1 // pred_check_branch
      %29 = sbr.rel (0) target = $region9
    $region8: #{_apply.2} parent=1 // pred_region
      _
    $region9: #{_apply.2} parent=1 // pred_fallthru
      _
    // Predicated region
    $region10: #{_apply.2} parent=1 // pred_check
      _
    $region11: #{_apply.2} parent=1 // pred_check_branch
      %31 = sbr.rel (0) target = $region13
    $region12: #{_apply.2} parent=1 // pred_region
      _
    $region13: #{_apply.2} parent=1 // pred_fallthru
      _
    // Predicated region
    $region14: #{_apply.2} parent=1 // pred_check
      _
    $region15: #{_apply.2} parent=1 // pred_check_branch
      %33 = sbr.rel (0) target = $region17
    $region16: #{_apply.2} parent=1 // pred_region
      %s35 = ssub.s32 1024, 1024
      %36 = vsyncadd [#allocation10], %s35
      %s37 = sshll.u32 [#allocation9], 4
      %s38 = int_to_ptr.vmem [resolvable:$true] %s37
      %43 = dma.hbm_to_vmem [thread:$0]  %s2, 1024, %s38, [#allocation10], 64, 64, 4
    $region17: #{_apply.2} parent=1 // pred_fallthru
      _
    // Predicated region
    $region18: #{_apply.2} parent=1 // pred_check
      _
    $region19: #{_apply.2} parent=1 // pred_check_branch
      %45 = sbr.rel (0) target = $region21
    $region20: #{_apply.2} parent=1 // pred_region
      _
    $region21: #{_apply.2} parent=1 // pred_fallthru
      _
    // Predicated region
    $region22: #{_apply.2} parent=1 // pred_check
      _
    $region23: #{_apply.2} parent=1 // pred_check_branch
      %47 = sbr.rel (0) target = $region25
    $region24: #{_apply.2} parent=1 // pred_region
      %s49 = ssub.s32 1024, 1024
      %50 = vsyncadd [#allocation10], %s49
      %s51 = sshll.u32 [#allocation11], 4
      %s52 = int_to_ptr.vmem [resolvable:$true] %s51
      %57 = dma.hbm_to_vmem [thread:$0]  %s4, 1024, %s52, [#allocation10], 64, 64, 4
    $region25: #{_apply.2} parent=1 // pred_fallthru
      _
    // Predicated region
    $region26: #{_apply.2} parent=1 // pred_check
      _
    $region27: #{_apply.2} parent=1 // pred_check_branch
      %59 = sbr.rel (0) target = $region29
    $region28: #{_apply.2} parent=1 // pred_region
      _
    $region29: #{_apply.2} parent=1 // pred_fallthru
      _
    // Predicated region
    $region30: #{_apply.2} parent=1 // pred_check
      _
    $region31: #{_apply.2} parent=1 // pred_check_branch
      %61 = sbr.rel (0) target = $region33
    $region32: #{_apply.2} parent=1 // pred_region
      %62 = dma.done [#allocation8], 256
    $region33: #{_apply.2} parent=1 // pred_fallthru
      _
    // Predicated region
    $region34: #{_apply.2} parent=1 // pred_check
      _
    $region35: #{_apply.2} parent=1 // pred_check_branch
      %64 = sbr.rel (0) target = $region37
    $region36: #{_apply.2} parent=1 // pred_region
      %65 = dma.done [#allocation10], 1024
    $region37: #{_apply.2} parent=1 // pred_fallthru
      _
    // Predicated region
    $region38: #{_apply.2} parent=1 // pred_check
      _
    $region39: #{_apply.2} parent=1 // pred_check_branch
      %67 = sbr.rel (0) target = $region41
    $region40: #{_apply.2} parent=1 // pred_region
      %68 = dma.done [#allocation10], 1024
    $region41: #{_apply.2} parent=1 // pred_fallthru
      _
    %v69 = vld [vmem:[#allocation7] sm:$0xff]
    %v70 = vlaneseq
    %v71 = vand.u32 %v70, 127
    %vm73 = vcmp.lt.s32.totalorder %v71, 32
    %v74 = vsel %vm73, %v69, %v13
    %s76 = ssub.s32 256, 1
    %77 = vst [vmem:[#allocation12] sm:%s76] %v74
    %s78 = scalar_lea.vmem [#allocation7], 8
    %v79 = vld [vmem:[%s78] sm:$0xff]
    %v80 = vlaneseq
    %v81 = vand.u32 %v80, 127
    %vm83 = vcmp.lt.s32.totalorder %v81, 32
    %v84 = vsel %vm83, %v79, %v13
    %s85 = scalar_lea.vmem [#allocation12], 8
    %s87 = ssub.s32 256, 1
    %88 = vst [vmem:[%s85] sm:%s87] %v84
    %v90 = vld [vmem:[#allocation12] sm:$0xff]
    %v91 = vld [vmem:[#allocation12 + $0x8] sm:$0xff]
    %v92 = vlaneseq
    %v93 = vand.u32 %v92, 127
    %vm94 = vcmp.lt.s32.totalorder %v93, 32
    %95 = vadd.xlane.f32.xlu0 %v90
    %v96 = vpop.xlane.xlu0 %95
    %97 = vadd.xlane.f32.xlu0 %v91
    %v98 = vpop.xlane.xlu0 %97
    %v99 = vmul.f32 %v96, 0.03125
    %v100 = vmul.f32 %v98, 0.03125
    %v101 = vsub.f32 %v90, %v99
    %v102 = vsub.f32 %v91, %v100
    %v103 = vsel %vm94, 1, 0
    %vm104 = vcmp.eq.s32.totalorder %v103, 1
    %v105 = vsel %vm104, %v101, 0.0
    %v106 = vsel %vm104, %v102, 0.0
    %v107 = vmul.f32 %v105, %v105
    %v108 = vmul.f32 %v106, %v106
    %109 = vadd.xlane.f32.xlu0 %v107
    %v110 = vpop.xlane.xlu0 %109
    %111 = vadd.xlane.f32.xlu0 %v108
    %v112 = vpop.xlane.xlu0 %111
    %v113 = vmul.f32 %v110, 0.03125
    %v114 = vmul.f32 %v112, 0.03125
    %v115 = vadd.f32 %v113, 1e-05
    %v116 = vadd.f32 %v114, 1e-05
    %v117 = vrsqrt.pop %v115
    %v118 = vrsqrt.pop %v116
    %v119 = vmul.f32 %v105, %v117
    %v120 = vmul.f32 %v106, %v118
    %v121 = vld [vmem:[%s0] sm:$0x1]
    %v123 = vlaneseq
    %v124 = vshrl.u32 %v123, 7
    %v125 = vsub.s32 0, %v124
    %v126 = vrot.slane %v121, %v125
    %v128 = vmul.f32 %v119, %v126
    %v129 = vmul.f32 %v120, %v126
    %v130 = vld [vmem:[%s1] sm:$0x1]
    %v132 = vlaneseq
    %v133 = vshrl.u32 %v132, 7
    %v134 = vsub.s32 0, %v133
    %v135 = vrot.slane %v130, %v134
    %v137 = vadd.f32 %v128, %v135
    %v138 = vadd.f32 %v129, %v135
    %v139 = vpack.c.bf16 %v138, %v137
    %v140 = vld [vmem:[#allocation9] sm:$0xf]
    %v141 = vld [vmem:[#allocation9 + $0x4] sm:$0xf]
    %v142 = vld [vmem:[#allocation9 + $0x8] sm:$0xf]
    %v143 = vld [vmem:[#allocation9 + $0xc] sm:$0xf]
    %v144 = vld [vmem:[#allocation9 + $0x10] sm:$0xf]
    %v145 = vld [vmem:[#allocation9 + $0x14] sm:$0xf]
    %v146 = vld [vmem:[#allocation9 + $0x18] sm:$0xf]
    %v147 = vld [vmem:[#allocation9 + $0x1c] sm:$0xf]
    %v148 = vld [vmem:[#allocation9 + $0x20] sm:$0xf]
    %v149 = vld [vmem:[#allocation9 + $0x24] sm:$0xf]
    %v150 = vld [vmem:[#allocation9 + $0x28] sm:$0xf]
    %v151 = vld [vmem:[#allocation9 + $0x2c] sm:$0xf]
    %v152 = vld [vmem:[#allocation9 + $0x30] sm:$0xf]
    %v153 = vld [vmem:[#allocation9 + $0x34] sm:$0xf]
    %v154 = vld [vmem:[#allocation9 + $0x38] sm:$0xf]
    %v155 = vld [vmem:[#allocation9 + $0x3c] sm:$0xf]
    %v156 = vld [vmem:[%s3] sm:$0x1]
    %v158 = vlaneseq
    %v159 = vshrl.u32 %v158, 7
    %v160 = vsub.s32 0, %v159
    %v161 = vrot.slane %v156, %v160
    %v179 = vunpack.c.l.b16 %v140
    %v180 = vunpack.c.l.b16 %v141
    %v181 = vunpack.c.l.b16 %v142
    %v182 = vunpack.c.l.b16 %v143
    %v183 = vunpack.c.l.b16 %v144
    %v184 = vunpack.c.l.b16 %v145
    %v185 = vunpack.c.l.b16 %v146
    %v186 = vunpack.c.l.b16 %v147
    %v187 = vunpack.c.l.b16 %v148
    %v188 = vunpack.c.l.b16 %v149
    %v189 = vunpack.c.l.b16 %v150
    %v190 = vunpack.c.l.b16 %v151
    %v191 = vunpack.c.l.b16 %v152
    %v192 = vunpack.c.l.b16 %v153
    %v193 = vunpack.c.l.b16 %v154
    %v194 = vunpack.c.l.b16 %v155
    %v195 = vpack.c.b16 %v180, %v179
    %v196 = vpack.c.b16 %v182, %v181
    %v197 = vpack.c.b16 %v184, %v183
    %v198 = vpack.c.b16 %v186, %v185
    %v199 = vpack.c.b16 %v188, %v187
    %v200 = vpack.c.b16 %v190, %v189
    %v201 = vpack.c.b16 %v192, %v191
    %v202 = vpack.c.b16 %v194, %v193
    %211 = vmatprep.subr.bf16.mxu0 0
    %212 = vmatpush1.bf16.msra.mxu0 %v202
    %213 = vmatprep.subr.bf16.mxu0 0
    %214 = vmatpush1.bf16.msra.mxu0 %v201
    %215 = vmatprep.subr.bf16.mxu0 0
    %216 = vmatpush1.bf16.msra.mxu0 %v200
    %217 = vmatprep.subr.bf16.mxu0 0
    %218 = vmatpush1.bf16.msra.mxu0 %v199
    %219 = vmatprep.subr.bf16.mxu0 0
    %220 = vmatpush1.bf16.msra.mxu0 %v198
    %221 = vmatprep.subr.bf16.mxu0 0
    %222 = vmatpush1.bf16.msra.mxu0 %v197
    %223 = vmatprep.subr.bf16.mxu0 0
    %224 = vmatpush1.bf16.msra.mxu0 %v196
    %225 = vmatprep.subr.bf16.mxu0 0
    %226 = vmatpush1.bf16.msra.mxu0 %v195
    %227 = vmatprep.subr.bf16.mxu0 0
    %228 = vmatpush2.bf16.msra.mxu0 0
    %229 = vmatprep.subr.bf16.mxu0 0
    %230 = vmatpush2.bf16.msra.mxu0 0
    %231 = vmatprep.subr.bf16.mxu0 0
    %232 = vmatpush2.bf16.msra.mxu0 0
    %233 = vmatprep.subr.bf16.mxu0 0
    %234 = vmatpush2.bf16.msra.mxu0 0
    %235 = vmatprep.subr.bf16.mxu0 0
    %236 = vmatpush2.bf16.msra.mxu0 0
    %237 = vmatprep.subr.bf16.mxu0 0
    %238 = vmatpush2.bf16.msra.mxu0 0
    %239 = vmatprep.subr.bf16.mxu0 0
    %240 = vmatpush2.bf16.msra.mxu0 0
    %241 = vmatprep.subr.bf16.mxu0 0
    %242 = vmatpush2.bf16.msra.mxu0 0
    %243 = vmatprep.mubr.bf16.mxu0 0
    %244 = vmatmul.mubr.bf16.gmra.mxu0 %v139
    %v245 = vpop.f32.mrf.mxu0
    %v246 = vadd.f32 %v161, %v245
    %v247 = vpop.f32.mrf.mxu0
    %v248 = vpop.f32.mrf.mxu0
    %v249 = vadd.f32 %v161, %v248
    %v250 = vpop.f32.mrf.mxu0
    %251 = vdwg.mxu0
    %v252 = vmax.f32 %v246, 0.0
    %v253 = vmax.f32 %v249, 0.0
    %v254 = vpack.c.bf16 %v253, %v252
    %v255 = vld [vmem:[#allocation11] sm:$0xf]
    %v256 = vld [vmem:[#allocation11 + $0x4] sm:$0xf]
    %v257 = vld [vmem:[#allocation11 + $0x8] sm:$0xf]
    %v258 = vld [vmem:[#allocation11 + $0xc] sm:$0xf]
    %v259 = vld [vmem:[#allocation11 + $0x10] sm:$0xf]
    %v260 = vld [vmem:[#allocation11 + $0x14] sm:$0xf]
    %v261 = vld [vmem:[#allocation11 + $0x18] sm:$0xf]
    %v262 = vld [vmem:[#allocation11 + $0x1c] sm:$0xf]
    %v263 = vld [vmem:[#allocation11 + $0x20] sm:$0xf]
    %v264 = vld [vmem:[#allocation11 + $0x24] sm:$0xf]
    %v265 = vld [vmem:[#allocation11 + $0x28] sm:$0xf]
    %v266 = vld [vmem:[#allocation11 + $0x2c] sm:$0xf]
    %v267 = vld [vmem:[#allocation11 + $0x30] sm:$0xf]
    %v268 = vld [vmem:[#allocation11 + $0x34] sm:$0xf]
    %v269 = vld [vmem:[#allocation11 + $0x38] sm:$0xf]
    %v270 = vld [vmem:[#allocation11 + $0x3c] sm:$0xf]
    %v287 = vunpack.c.l.b16 %v255
    %v288 = vunpack.c.l.b16 %v256
    %v289 = vunpack.c.l.b16 %v257
    %v290 = vunpack.c.l.b16 %v258
    %v291 = vunpack.c.l.b16 %v259
    %v292 = vunpack.c.l.b16 %v260
    %v293 = vunpack.c.l.b16 %v261
    %v294 = vunpack.c.l.b16 %v262
    %v295 = vunpack.c.l.b16 %v263
    %v296 = vunpack.c.l.b16 %v264
    %v297 = vunpack.c.l.b16 %v265
    %v298 = vunpack.c.l.b16 %v266
    %v299 = vunpack.c.l.b16 %v267
    %v300 = vunpack.c.l.b16 %v268
    %v301 = vunpack.c.l.b16 %v269
    %v302 = vunpack.c.l.b16 %v270
    %v303 = vpack.c.b16 %v288, %v287
    %v304 = vpack.c.b16 %v290, %v289
    %v305 = vpack.c.b16 %v292, %v291
    %v306 = vpack.c.b16 %v294, %v293
    %v307 = vpack.c.b16 %v296, %v295
    %v308 = vpack.c.b16 %v298, %v297
    %v309 = vpack.c.b16 %v300, %v299
    %v310 = vpack.c.b16 %v302, %v301
    %319 = vmatprep.subr.bf16.mxu0 0
    %320 = vmatpush1.bf16.msra.mxu0 %v310
    %321 = vmatprep.subr.bf16.mxu0 0
    %322 = vmatpush1.bf16.msra.mxu0 %v309
    %323 = vmatprep.subr.bf16.mxu0 0
    %324 = vmatpush1.bf16.msra.mxu0 %v308
    %325 = vmatprep.subr.bf16.mxu0 0
    %326 = vmatpush1.bf16.msra.mxu0 %v307
    %327 = vmatprep.subr.bf16.mxu0 0
    %328 = vmatpush1.bf16.msra.mxu0 %v306
    %329 = vmatprep.subr.bf16.mxu0 0
    %330 = vmatpush1.bf16.msra.mxu0 %v305
    %331 = vmatprep.subr.bf16.mxu0 0
    %332 = vmatpush1.bf16.msra.mxu0 %v304
    %333 = vmatprep.subr.bf16.mxu0 0
    %334 = vmatpush1.bf16.msra.mxu0 %v303
    %335 = vmatprep.subr.bf16.mxu0 0
    %336 = vmatpush2.bf16.msra.mxu0 0
    %337 = vmatprep.subr.bf16.mxu0 0
    %338 = vmatpush2.bf16.msra.mxu0 0
    %339 = vmatprep.subr.bf16.mxu0 0
    %340 = vmatpush2.bf16.msra.mxu0 0
    %341 = vmatprep.subr.bf16.mxu0 0
    %342 = vmatpush2.bf16.msra.mxu0 0
    %343 = vmatprep.subr.bf16.mxu0 0
    %344 = vmatpush2.bf16.msra.mxu0 0
    %345 = vmatprep.subr.bf16.mxu0 0
    %346 = vmatpush2.bf16.msra.mxu0 0
    %347 = vmatprep.subr.bf16.mxu0 0
    %348 = vmatpush2.bf16.msra.mxu0 0
    %349 = vmatprep.subr.bf16.mxu0 0
    %350 = vmatpush2.bf16.msra.mxu0 0
    %351 = vmatprep.mubr.bf16.mxu0 0
    %352 = vmatmul.mubr.bf16.gmra.mxu0 %v254
    %v353 = vpop.f32.mrf.mxu0
    %v354 = vadd.f32 0.0, %v353
    %v355 = vpop.f32.mrf.mxu0
    %v356 = vpop.f32.mrf.mxu0
    %v357 = vadd.f32 0.0, %v356
    %v358 = vpop.f32.mrf.mxu0
    %359 = vdwg.mxu0
    %v360 = vadd.f32 %v90, %v354
    %v361 = vadd.f32 %v91, %v357
    %v362 = vld [vmem:[%s5] sm:$0x1]
    %v364 = vlaneseq
    %v365 = vshrl.u32 %v364, 7
    %v366 = vsub.s32 0, %v365
    %v367 = vrot.slane %v362, %v366
    %v369 = vadd.f32 %v360, %v367
    %v370 = vadd.f32 %v361, %v367
    %371 = vst [vmem:[%s8] sm:$0xff] %v369
    %372 = vst [vmem:[%s8 + $0x8] sm:$0xff] %v370
    // Predicated region
    $region42: #{_apply.2} parent=1 // pred_check
      _
    $region43: #{_apply.2} parent=1 // pred_check_branch
      %374 = sbr.rel (0) target = $region45
    $region44: #{_apply.2} parent=1 // pred_region
      _
    $region45: #{_apply.2} parent=1 // pred_fallthru
      _
    // Predicated region
    $region46: #{_apply.2} parent=1 // pred_check
      _
    $region47: #{_apply.2} parent=1 // pred_check_branch
      %376 = sbr.rel (0) target = $region49
    $region48: #{_apply.2} parent=1 // pred_region
      _
    $region49: #{_apply.2} parent=1 // pred_fallthru
      _
    %377 = vsyncpa [#allocation8], 1
    %378 = vsyncpa [#allocation10], 1

</llo_original>
